<compile_context>
chip_gen: v7x
topology: tpu7x:2x2x1
jax: 0.10.0
libtpu: 0.0.40
codegen_flags: <defaults>
</compile_context>

<pallas_src>
import jax
import jax.numpy as jnp
from jax.experimental import pallas as pl
from jax.experimental.pallas import tpu as pltpu

_LANE = 128


def _round_up(x, m):
    return ((x + m - 1) // m) * m


def _vmem_capacity_bytes():
    try:
        return int(pltpu.get_tpu_info().vmem_capacity_bytes)
    except Exception:
        return 64 * 1024 * 1024  # conservative: v7x per-TensorCore VMEM


def _pick_tile(dim, max_tile, min_tile):
    """Largest halving of max_tile whose padding waste is <= dim/8."""
    cand = max_tile
    while cand > min_tile:
        pad = _round_up(dim, cand) - dim
        if pad == 0 or pad * 8 <= dim:
            return cand
        cand //= 2
    return min_tile


def _pick_divisor_tile(padded_dim, max_tile, min_tile=_LANE):
    """Largest halving of max_tile that divides padded_dim (>= min_tile)."""
    cand = max_tile
    while cand > min_tile:
        if padded_dim % cand == 0:
            return cand
        cand //= 2
    return min_tile


# ----------------------------- kernels ------------------------------------


def _resident_matmul_kernel(x_ref, w_ref, o_ref):
    """Whole sparse weight resident in VMEM; one MXU matmul per M tile."""
    o_ref[...] = jnp.dot(
        x_ref[...], w_ref[...], preferred_element_type=jnp.float32
    ).astype(o_ref.dtype)


def _tiled_matmul_kernel_f32_out(x_ref, w_ref, o_ref):
    """(tm, tn) tile accumulated over K directly into the resident f32 output."""

    @pl.when(pl.program_id(2) == 0)
    def _init():
        o_ref[...] = jnp.zeros_like(o_ref)

    o_ref[...] += jnp.dot(
        x_ref[...], w_ref[...], preferred_element_type=jnp.float32
    )


def _tiled_matmul_kernel_scratch(x_ref, w_ref, o_ref, acc_ref):
    """Scratch-accumulator variant for narrow (non-f32) output dtypes."""

    @pl.when(pl.program_id(2) == 0)
    def _init():
        acc_ref[...] = jnp.zeros_like(acc_ref)

    acc_ref[...] += jnp.dot(
        x_ref[...], w_ref[...], preferred_element_type=jnp.float32
    )

    @pl.when(pl.program_id(2) == pl.num_programs(2) - 1)
    def _finalize():
        o_ref[...] = acc_ref[...].astype(o_ref.dtype)


# ----------------------------- parameter prep -----------------------------


def prepare_sparse_weight(weight, mask, compute_dtype=jnp.bfloat16):
    """Fold the static sparsity mask into the weight, cast to the MXU compute
    dtype and pad to lane-aligned (K_pad, N_pad) ONCE at parameter-setup time.

    Doing this inside every forward call would re-stream the full KxN weight
    through HBM several extra times per call.
    """
    sparse_w = weight * mask
    if compute_dtype is not None:
        sparse_w = sparse_w.astype(compute_dtype)
    K, N = sparse_w.shape
    K_pad = _round_up(K, _LANE)
    N_pad = _round_up(N, _LANE)
    if (K_pad, N_pad) != (K, N):
        sparse_w = jnp.pad(sparse_w, ((0, K_pad - K), (0, N_pad - N)))
    return sparse_w


# ----------------------------- forward -------------------------------------


def sparse_fcn_forward(
    x,
    sparse_w_padded,
    output_dim,
    *,
    tile_m=512,
    tile_n=512,
    tile_k=512,
    weight_resident=None,  # None = auto, True/False = force
):
    """out = x @ (weight * mask), with the folded/padded weight from
    prepare_sparse_weight().  x: (..., input_dim) -> (..., output_dim)."""
    orig_dtype = x.dtype
    *lead, K = x.shape
    K_pad, N_pad = sparse_w_padded.shape
    N = output_dim
    assert K <= K_pad < K + _LANE, "sparse_w_padded K dim inconsistent with x"
    assert N <= N_pad < N + _LANE, "sparse_w_padded N dim inconsistent with output_dim"

    M = 1
    for d in lead:
        M *= d
    x2d = x.reshape(M, K)

    compute_dtype = sparse_w_padded.dtype
    if x2d.dtype != compute_dtype:
        x2d = x2d.astype(compute_dtype)

    cbytes = jnp.dtype(compute_dtype).itemsize
    obytes = jnp.dtype(orig_dtype).itemsize
    # bf16 packs 16 rows per sublane group -> round M tiles to 16, else 8.
    sub = 16 if cbytes <= 2 else 8

    tm = _pick_tile(M, tile_m, sub)
    M_pad = _round_up(M, tm)

    vmem_cap = _vmem_capacity_bytes()
    w_bytes = K_pad * N_pad * cbytes
    resident_budget = min(vmem_cap // 4, 24 * 1024 * 1024)

    if weight_resident is None:
        use_resident = w_bytes <= resident_budget
    else:
        use_resident = bool(weight_resident)

    if use_resident:
        # Give both TensorCores work on v7x when M allows it.
        while M_pad // tm < 2 and tm // 2 >= sub and M_pad % (tm // 2) == 0:
            tm //= 2
        est = w_bytes + 2 * tm * K_pad * cbytes + 2 * tm * N_pad * obytes
        if est > vmem_cap // 2:
            use_resident = False  # fall back to tiled path

    # Pad x only by the small amounts required: M to the chosen tm multiple,
    # K to the (128-aligned) padded weight K. Extra K rows of sparse_w are 0,
    # so padded K columns of x contribute nothing to the accumulation.
    if (M_pad, K_pad) != (M, K):
        x2d = jnp.pad(x2d, ((0, M_pad - M), (0, K_pad - K)))

    if use_resident:
        grid = (M_pad // tm,)
        est = w_bytes + 2 * tm * K_pad * cbytes + 2 * tm * N_pad * obytes
        vmem_needed = est + (4 << 20)
        cost = pl.CostEstimate(
            flops=2 * M_pad * K_pad * N_pad,
            transcendentals=0,
            bytes_accessed=int(
                M_pad * K_pad * cbytes + w_bytes + M_pad * N_pad * obytes
            ),
        )
        out2d = pl.pallas_call(
            _resident_matmul_kernel,
            out_shape=jax.ShapeDtypeStruct((M_pad, N_pad), orig_dtype),
            grid_spec=pltpu.PrefetchScalarGridSpec(
                num_scalar_prefetch=0,
                grid=grid,
                in_specs=[
                    # x tile: (tm, K_pad), marched along M
                    pl.BlockSpec((tm, K_pad), lambda i: (i, 0)),
                    # whole weight: constant block index -> DMA'd once, resident
                    pl.BlockSpec((K_pad, N_pad), lambda i: (0, 0)),
                ],
                out_specs=pl.BlockSpec((tm, N_pad), lambda i: (i, 0)),
            ),
            compiler_params=pltpu.CompilerParams(
                dimension_semantics=("parallel",),
                vmem_limit_bytes=(vmem_needed if vmem_needed > (16 << 20) else None),
            ),
            cost_estimate=cost,
        )(x2d, sparse_w_padded)
    else:
        # tn/tk are divisors of the already-128-aligned padded dims: no extra
        # N/K padding beyond the one-time weight prep.
        tn = _pick_divisor_tile(N_pad, tile_n)
        tk = _pick_divisor_tile(K_pad, tile_k)
        while (
            (M_pad // tm) * (N_pad // tn) < 2
            and tm // 2 >= sub
            and M_pad % (tm // 2) == 0
        ):
            tm //= 2
        grid = (M_pad // tm, N_pad // tn, K_pad // tk)

        acc_into_out = jnp.dtype(orig_dtype) == jnp.dtype(jnp.float32)
        if acc_into_out:
            kernel = _tiled_matmul_kernel_f32_out
            scratch_shapes = []
            acc_bytes = 0
        else:
            kernel = _tiled_matmul_kernel_scratch
            scratch_shapes = [pltpu.VMEM((tm, tn), jnp.float32)]
            acc_bytes = tm * tn * 4

        est = 2 * (tm * tk + tk * tn) * cbytes + 2 * tm * tn * obytes + acc_bytes
        vmem_needed = est + (4 << 20)
        cost = pl.CostEstimate(
            flops=2 * M_pad * K_pad * N_pad,
            transcendentals=0,
            bytes_accessed=int(
                M_pad * K_pad * cbytes * (N_pad // tn)  # x refetched per N tile
                + w_bytes * (M_pad // tm)               # w refetched per M tile
                + M_pad * N_pad * obytes
            ),
        )
        # NOTE: prefer growing tk over pl.Buffered(3); only add deeper
        # buffering if profiling shows exposed K-axis DMA.
        out2d = pl.pallas_call(
            kernel,
            out_shape=jax.ShapeDtypeStruct((M_pad, N_pad), orig_dtype),
            grid_spec=pltpu.PrefetchScalarGridSpec(
                num_scalar_prefetch=0,
                grid=grid,
                in_specs=[
                    pl.BlockSpec((tm, tk), lambda i, j, k: (i, k)),
                    pl.BlockSpec((tk, tn), lambda i, j, k: (k, j)),
                ],
                out_specs=pl.BlockSpec((tm, tn), lambda i, j, k: (i, j)),
                scratch_shapes=scratch_shapes,
            ),
            compiler_params=pltpu.CompilerParams(
                dimension_semantics=("parallel", "parallel", "arbitrary"),
                vmem_limit_bytes=(vmem_needed if vmem_needed > (16 << 20) else None),
            ),
            cost_estimate=cost,
        )(x2d, sparse_w_padded)

    out2d = out2d[:M, :N]
    return out2d.reshape(*lead, N)


# ----------------------------- init / reference ----------------------------


def init_sparse_fcn(key, input_dim, output_dim, sparsity=0.9, dtype=jnp.float32):
    """Deterministic parameter init mirroring SparseFCN.__init__."""
    # xavier_uniform_: U(-a, a) with a = sqrt(6 / (fan_in + fan_out))
    a = (6.0 / (input_dim + output_dim)) ** 0.5
    weight = jax.random.uniform(
        key, (input_dim, output_dim), dtype=dtype, minval=-a, maxval=a
    )
    # mask: 1 at the top-k |weight| entries, k = numel * (1 - sparsity)
    # (sparsity=1.0 would give an all-zero mask, matching the torch edge case)
    numel = input_dim * output_dim
    num_keep = int(numel * (1.0 - sparsity))
    flat_abs = jnp.abs(weight).reshape(-1)
    _, idx = jax.lax.top_k(flat_abs, num_keep)
    mask = (
        jnp.zeros((numel,), dtype=dtype)
        .at[idx]
        .set(1.0)
        .reshape(input_dim, output_dim)
    )
    return weight, mask


def reference_forward(x, weight, mask):
    return jnp.matmul(x, weight * mask)


if __name__ == "__main__":
    key = jax.random.PRNGKey(0)
    k_w, k_x = jax.random.split(key)

    batch, seq = 2, 8
    input_dim, output_dim = 32, 64
    sparsity = 0.9

    weight, mask = init_sparse_fcn(k_w, input_dim, output_dim, sparsity)
    x = jax.random.normal(k_x, (batch, seq, input_dim), dtype=jnp.float32)

    ref = reference_forward(x, weight, mask)

    # 1) float32 compute, weight-resident path: matches the PyTorch reference.
    sw_f32 = prepare_sparse_weight(weight, mask, compute_dtype=None)
    out_f32 = jax.block_until_ready(sparse_fcn_forward(x, sw_f32, output_dim))
    assert out_f32.shape == (batch, seq, output_dim)
    assert jnp.allclose(out_f32, ref, atol=1e-5, rtol=1e-5)

    # 2) float32 compute, forced tiled (M,N,K) path: exercises the big-layer path.
    out_tiled = jax.block_until_ready(
        sparse_fcn_forward(x, sw_f32, output_dim, weight_resident=False)
    )
    assert jnp.allclose(out_tiled, ref, atol=1e-5, rtol=1e-5)

    # 3) default bf16 MXU inputs (f32 accumulation): intentional precision
    #    relaxation vs. the float32 reference, hence the looser tolerance.
    sw_bf16 = prepare_sparse_weight(weight, mask)
    out_bf16 = jax.block_until_ready(sparse_fcn_forward(x, sw_bf16, output_dim))
    assert out_bf16.shape == (batch, seq, output_dim)
    assert jnp.allclose(out_bf16, ref, atol=3e-2, rtol=3e-2)

    print("KERNEL_OK")
</pallas_src>

<mosaic_0001>
module attributes {stable_mosaic.version = 11 : i64} {
  func.func @_resident_matmul_kernel(%arg0: i32, %arg1: memref<8x128xf32, #tpu.memory_space<vmem>>, %arg2: memref<128x128xf32, #tpu.memory_space<vmem>>, %arg3: memref<8x128xf32, #tpu.memory_space<vmem>>) attributes {dimension_semantics = [#tpu.dimension_semantics<parallel>], iteration_bounds = array<i64: 2>, scalar_prefetch = 0 : i64, scratch_operands = 0 : i64, tpu.core_type = #tpu.core_type<tc>, window_params = [{transform_indices = @transform_0, window_bounds = array<i64: 8, 128>}, {pipeline_mode = #tpu.pipeline_mode<synchronous>, transform_indices = @transform_1, window_bounds = array<i64: 128, 128>}, {transform_indices = @transform_2, window_bounds = array<i64: 8, 128>}]} {
    %c0 = arith.constant 0 : index
    %c0_0 = arith.constant 0 : index
    %0 = vector.load %arg1[%c0, %c0_0] : memref<8x128xf32, #tpu.memory_space<vmem>>, vector<8x128xf32>
    %c0_1 = arith.constant 0 : index
    %c0_2 = arith.constant 0 : index
    %1 = vector.load %arg2[%c0_1, %c0_2] : memref<128x128xf32, #tpu.memory_space<vmem>>, vector<128x128xf32>
    %cst = arith.constant dense<0.000000e+00> : vector<8x128xf32>
    %2 = tpu.matmul %0, %1, %cst {dimension_numbers = #tpu.dot_dimension_numbers<[1], [0], [0], [1], [0, 0, 1, 1], [], []>} : vector<8x128xf32>, vector<128x128xf32>, vector<8x128xf32> -> vector<8x128xf32>
    %c0_3 = arith.constant 0 : index
    %c0_4 = arith.constant 0 : index
    %3 = vector.load %arg3[%c0_3, %c0_4] : memref<8x128xf32, #tpu.memory_space<vmem>>, vector<8x128xf32>
    tpu.vector_store %arg3[%c0_3, %c0_4], %2 {strides = array<i32>} : memref<8x128xf32, #tpu.memory_space<vmem>>, vector<8x128xf32>,
    return
  }
  func.func @transform_0(%arg0: i32) -> (i32, i32) {
    %c0_i32 = arith.constant 0 : i32
    %c0_i32_0 = arith.constant 0 : i32
    return %arg0, %c0_i32 : i32, i32
  }
  func.func @transform_1(%arg0: i32) -> (i32, i32) {
    %c0_i32 = arith.constant 0 : i32
    %c0_i32_0 = arith.constant 0 : i32
    %c0_i32_1 = arith.constant 0 : i32
    return %c0_i32, %c0_i32_0 : i32, i32
  }
  func.func @transform_2(%arg0: i32) -> (i32, i32) {
    %c0_i32 = arith.constant 0 : i32
    %c0_i32_0 = arith.constant 0 : i32
    return %arg0, %c0_i32 : i32, i32
  }
}

</mosaic_0001>

<llo_original>
// kernel: tpu_custom_call.1
$region0: #{tpu_custom_call.1}
  #allocation0 [shape = 'u32[]', space=smem, size = 0x4, offset = 0x4, fixed_abs, tag = 'smem constant byte address 0x4 - core index']
  #allocation1 [shape = 'u32[144,128]{1,0:T(1,128)}', space=vmem, size = 0x12000, scoped, tag = 'internal scratch']
  %s0 = inlined_call_operand.hbm [shape: f32[16,128], index: 0, kind: input, shape index: {}]
  %s1 = inlined_call_operand.hbm [shape: f32[128,128], index: 1, kind: input, shape index: {}]
  %s2 = inlined_call_operand.hbm [shape: f32[16,128], index: 2, kind: output, shape index: {}]
  %s3 = sld [smem:[#allocation0]]
  $region49: #{tpu_custom_call.1} parent=0
    _
  %s5 = ssub.s32 1, %s3
  %s6 = scalar_select 0, %s5, %s3
  $region1: #{tpu_custom_call.1} parent=0
    #allocation2 [shape = 'u8[8192]{0}', space=vmem, size = 0x2000, scoped, tag = 'input window, operand 0']
    #allocation3 [shape = 's32[2]{0}', space=sflag, size = 0x8, scoped, tag = 'scoped memory for tpu_custom_call.1']
    #allocation4 [shape = 's32[2]{0}', space=sflag, size = 0x8, scoped, tag = 'scoped memory for tpu_custom_call.1']
    #allocation5 [shape = 'u8[65536]{0}', space=vmem, size = 0x10000, scoped, tag = 'input window, operand 1, single buffered']
    #allocation6 [shape = 's32[1]{0}', space=sflag, size = 0x4, scoped, tag = 'scoped memory for tpu_custom_call.1']
    #allocation7 [shape = 'u8[8192]{0}', space=vmem, size = 0x2000, scoped, tag = 'output window, operand 0']
    %7 = vsyncpa [#allocation3], 0
    %s8 = scalar_lea.sflag [#allocation3], 1
    %9 = vsyncpa %s8, 0
    %10 = vsyncpa [#allocation6], 0
    %11 = vsyncpa [#allocation4], 0
    %s12 = scalar_lea.sflag [#allocation4], 1
    %13 = vsyncpa %s12, 0
    loop: start=0, step=1, limit=4
    $region2: #{tpu_custom_call.1} parent=1 // loop_pre_header
      _
    $region3: #{tpu_custom_call.1} parent=1 // loop_header
      %s15 = sphi 0, %s19
      %p16 = scmp.ge.s32.totalorder %s15, 4
      %s25 = sphi 0, %s27
      %s28 = sphi 0, %s25
      %s29 = sphi 0, %s28
      %s45 = sphi 0, %s29
      %s49 = sphi 0, %s49
      %s51 = sphi 0, %s49
      %s52 = sphi 0, %s51
      %s66 = sphi 0, %s52
      %s72 = sphi 0, %s74
      %s75 = sphi 0, %s72
      %s76 = sphi 0, %s75
      %s92 = sphi 0, %s76
    $region4: #{tpu_custom_call.1} parent=1 // loop_header_branch
      %18 = sbr.rel (%p16) target = $region8
    $region5: #{tpu_custom_call.1} parent=1 // loop_body
      %s20 = ssub.s32 %s15, 1
      %s21 = ssub.s32 %s15, 2
      %s22 = sadd.s32 %s15, 1
      %s23 = ssub.s32 %s15, %s22
      %p24 = scmp.eq.s32.totalorder %s23, 0
      %s26 = sadd.s32 %s25, 1
      %s27 = scalar_select %p24, %s25, %s26
      %p30 = pneg %p24
      %p31 = scmp.eq.s32.totalorder %s15, 1
      %p32 = por %p30, %p31
      %p33 = scmp.ne.s32.totalorder %s25, %s28
      %p34 = scmp.eq.s32.totalorder %s15, 0
      %p35 = por %p33, %p34
      %p36 = scmp.ne.s32.totalorder %s25, %s28
      %p37 = scmp.eq.s32.totalorder %s20, 1
      %p38 = por %p36, %p37
      %p39 = scmp.ne.s32.totalorder %s28, %s29
      %p40 = scmp.eq.s32.totalorder %s20, 0
      %p41 = por %p39, %p40
      %p42 = scmp.ne.s32.totalorder %s28, %s29
      %p43 = scmp.eq.s32.totalorder %s21, 1
      %p44 = por %p42, %p43
      %p46 = scmp.ne.s32.totalorder %s29, %s45
      %p47 = scmp.eq.s32.totalorder %s21, 0
      %p48 = por %p46, %p47
      %s50 = sadd.s32 %s49, 1
      %p53 = scmp.eq.s32.totalorder %s15, 1
      %p54 = scmp.ne.s32.totalorder %s49, %s51
      %p55 = scmp.eq.s32.totalorder %s15, 0
      %p56 = por %p54, %p55
      %p57 = scmp.ne.s32.totalorder %s49, %s51
      %p58 = scmp.eq.s32.totalorder %s20, 1
      %p59 = por %p57, %p58
      %p60 = scmp.ne.s32.totalorder %s51, %s52
      %p61 = scmp.eq.s32.totalorder %s20, 0
      %p62 = por %p60, %p61
      %p63 = scmp.ne.s32.totalorder %s51, %s52
      %p64 = scmp.eq.s32.totalorder %s21, 1
      %p65 = por %p63, %p64
      %p67 = scmp.ne.s32.totalorder %s52, %s66
      %p68 = scmp.eq.s32.totalorder %s21, 0
      %p69 = por %p67, %p68
      %s70 = ssub.s32 %s15, %s22
      %p71 = scmp.eq.s32.totalorder %s70, 0
      %s73 = sadd.s32 %s72, 1
      %s74 = scalar_select %p71, %s72, %s73
      %p77 = pneg %p71
      %p78 = scmp.eq.s32.totalorder %s15, 1
      %p79 = por %p77, %p78
      %p80 = scmp.ne.s32.totalorder %s72, %s75
      %p81 = scmp.eq.s32.totalorder %s15, 0
      %p82 = por %p80, %p81
      %p83 = scmp.ne.s32.totalorder %s72, %s75
      %p84 = scmp.eq.s32.totalorder %s20, 1
      %p85 = por %p83, %p84
      %p86 = scmp.ne.s32.totalorder %s75, %s76
      %p87 = scmp.eq.s32.totalorder %s20, 0
      %p88 = por %p86, %p87
      %p89 = scmp.ne.s32.totalorder %s75, %s76
      %p90 = scmp.eq.s32.totalorder %s21, 1
      %p91 = por %p89, %p90
      %p93 = scmp.ne.s32.totalorder %s76, %s92
      %p94 = scmp.eq.s32.totalorder %s21, 0
      %p95 = por %p93, %p94
      %p96 = scmp.le.s32.totalorder 1, %s15
      %p97 = scmp.lt.s32.totalorder %s15, 3
      %p98 = pnand %p96, %p97
      %p99 = pneg %p98
      // Predicated region
      $region9: #{tpu_custom_call.1} parent=5 // pred_check
        _
      $region10: #{tpu_custom_call.1} parent=5 // pred_check_branch
        %101 = sbr.rel (%p98) target = $region12
      $region11: #{tpu_custom_call.1} parent=5 // pred_region
        %s102 = ssub.s32 %s15, 1
        // Predicated region
        $region13: #{tpu_custom_call.1} parent=11 // pred_check
          %p103 = pneg %p62
        $region14: #{tpu_custom_call.1} parent=11 // pred_check_branch
          %105 = sbr.rel (%p103) target = $region16
        $region15: #{tpu_custom_call.1} parent=11 // pred_region
          %s107 = ssub.s32 2048, 2048
          %108 = vsyncadd [#allocation6], %s107
          %s109 = sshll.u32 [#allocation5], 4
          %s110 = int_to_ptr.vmem [resolvable:$true] %s109
          %115 = dma.hbm_to_vmem [thread:$0]  %s1, 2048, %s110, [#allocation6], 128, 128, 8
        $region16: #{tpu_custom_call.1} parent=11 // pred_fallthru
          _
      $region12: #{tpu_custom_call.1} parent=5 // pred_fallthru
        _
      %p116 = scmp.lt.s32.totalorder %s15, 2
      // Predicated region
      $region17: #{tpu_custom_call.1} parent=5 // pred_check
        %p117 = pneg %p116
      $region18: #{tpu_custom_call.1} parent=5 // pred_check_branch
        %119 = sbr.rel (%p117) target = $region20
      $region19: #{tpu_custom_call.1} parent=5 // pred_region
        // Predicated region
        $region21: #{tpu_custom_call.1} parent=19 // pred_check
          %p120 = pneg %p35
        $region22: #{tpu_custom_call.1} parent=19 // pred_check_branch
          %122 = sbr.rel (%p120) target = $region24
        $region23: #{tpu_custom_call.1} parent=19 // pred_region
          %s123 = sand.u32 %s25, 1
          %s124 = scalar_lea.sflag [#allocation3], %s123
          %s125 = sand.u32 %s25, 1
          %s126 = smul.addr %s125, 8
          %s127 = scalar_lea.vmem [#allocation2], %s126
          %s129 = ssub.s32 128, 128
          %130 = vsyncadd %s124, %s129
          %s131 = smul.addr %s15, 128
          %s132 = scalar_lea.hbm %s0, %s131
          %s134 = sshll.u32 %s127, 4
          %s135 = int_to_ptr.vmem [resolvable:$true] %s134
          %137 = dma.hbm_to_vmem [thread:$0]  %s132, 128, %s135, %s124
        $region24: #{tpu_custom_call.1} parent=19 // pred_fallthru
          _
      $region20: #{tpu_custom_call.1} parent=5 // pred_fallthru
        _
      %p138 = scmp.le.s32.totalorder 1, %s15
      %p139 = scmp.lt.s32.totalorder %s15, 3
      %p140 = pnand %p138, %p139
      %p141 = pneg %p140
      // Predicated region
      $region25: #{tpu_custom_call.1} parent=5 // pred_check
        _
      $region26: #{tpu_custom_call.1} parent=5 // pred_check_branch
        %143 = sbr.rel (%p140) target = $region28
      $region27: #{tpu_custom_call.1} parent=5 // pred_region
        %s144 = ssub.s32 %s15, 1
        %s145 = sand.u32 %s28, 1
        %s146 = scalar_lea.sflag [#allocation3], %s145
        %s147 = sand.u32 %s28, 1
        %s148 = smul.addr %s147, 8
        %s149 = scalar_lea.vmem [#allocation2], %s148
        // Predicated region
        $region29: #{tpu_custom_call.1} parent=27 // pred_check
          %p150 = pneg %p41
        $region30: #{tpu_custom_call.1} parent=27 // pred_check_branch
          %152 = sbr.rel (%p150) target = $region32
        $region31: #{tpu_custom_call.1} parent=27 // pred_region
          %153 = dma.done %s146, 128
        $region32: #{tpu_custom_call.1} parent=27 // pred_fallthru
          _
        // Predicated region
        $region33: #{tpu_custom_call.1} parent=27 // pred_check
          %p154 = pneg %p62
        $region34: #{tpu_custom_call.1} parent=27 // pred_check_branch
          %156 = sbr.rel (%p154) target = $region36
        $region35: #{tpu_custom_call.1} parent=27 // pred_region
          %157 = dma.done [#allocation6], 2048
        $region36: #{tpu_custom_call.1} parent=27 // pred_fallthru
          _
        %s158 = sand.u32 %s28, 1
        %s159 = scalar_lea.sflag [#allocation3], %s158
        %s160 = sand.u32 %s28, 1
        %s161 = smul.addr %s160, 8
        %s162 = scalar_lea.vmem [#allocation2], %s161
        %p163 = pneg %p41
        %p164 = pneg %p38
        %p165 = pneg %p62
        %p166 = pneg %p59
        %p167 = pneg %p88
        %p168 = pneg %p85
        %s169 = sand.u32 %s75, 1
        %s170 = scalar_lea.sflag [#allocation4], %s169
        %s171 = sand.u32 %s75, 1
        %s172 = smul.addr %s171, 8
        %s173 = scalar_lea.vmem [#allocation7], %s172
        %v174 = vld [vmem:[%s149] sm:$0xff]
        %v175 = vld [vmem:[#allocation5] sm:$0xff]
        %v176 = vld [vmem:[#allocation5 + $0x8] sm:$0xff]
        %v177 = vld [vmem:[#allocation5 + $0x10] sm:$0xff]
        %v178 = vld [vmem:[#allocation5 + $0x18] sm:$0xff]
        %v179 = vld [vmem:[#allocation5 + $0x20] sm:$0xff]
        %v180 = vld [vmem:[#allocation5 + $0x28] sm:$0xff]
        %v181 = vld [vmem:[#allocation5 + $0x30] sm:$0xff]
        %v182 = vld [vmem:[#allocation5 + $0x38] sm:$0xff]
        %v183 = vld [vmem:[#allocation5 + $0x40] sm:$0xff]
        %v184 = vld [vmem:[#allocation5 + $0x48] sm:$0xff]
        %v185 = vld [vmem:[#allocation5 + $0x50] sm:$0xff]
        %v186 = vld [vmem:[#allocation5 + $0x58] sm:$0xff]
        %v187 = vld [vmem:[#allocation5 + $0x60] sm:$0xff]
        %v188 = vld [vmem:[#allocation5 + $0x68] sm:$0xff]
        %v189 = vld [vmem:[#allocation5 + $0x70] sm:$0xff]
        %v190 = vld [vmem:[#allocation5 + $0x78] sm:$0xff]
        %191 = vmatprep.subr.mxu0 0.0
        %192 = vmatpush1.msra.mxu0 %v175
        %193 = vmatprep.subr.mxu0 0.0
        %194 = vmatpush1.msra.mxu0 %v176
        %195 = vmatprep.subr.mxu0 0.0
        %196 = vmatpush1.msra.mxu0 %v177
        %197 = vmatprep.subr.mxu0 0.0
        %198 = vmatpush1.msra.mxu0 %v178
        %199 = vmatprep.subr.mxu0 0.0
        %200 = vmatpush1.msra.mxu0 %v179
        %201 = vmatprep.subr.mxu0 0.0
        %202 = vmatpush1.msra.mxu0 %v180
        %203 = vmatprep.subr.mxu0 0.0
        %204 = vmatpush1.msra.mxu0 %v181
        %205 = vmatprep.subr.mxu0 0.0
        %206 = vmatpush1.msra.mxu0 %v182
        %207 = vmatprep.subr.mxu0 0.0
        %208 = vmatpush1.msra.mxu0 %v183
        %209 = vmatprep.subr.mxu0 0.0
        %210 = vmatpush1.msra.mxu0 %v184
        %211 = vmatprep.subr.mxu0 0.0
        %212 = vmatpush1.msra.mxu0 %v185
        %213 = vmatprep.subr.mxu0 0.0
        %214 = vmatpush1.msra.mxu0 %v186
        %215 = vmatprep.subr.mxu0 0.0
        %216 = vmatpush1.msra.mxu0 %v187
        %217 = vmatprep.subr.mxu0 0.0
        %218 = vmatpush1.msra.mxu0 %v188
        %219 = vmatprep.subr.mxu0 0.0
        %220 = vmatpush1.msra.mxu0 %v189
        %221 = vmatprep.subr.mxu0 0.0
        %222 = vmatpush1.msra.mxu0 %v190
        %223 = vmatprep.subr.mxu0 0.0
        %224 = vmatpush1.msra.mxu0 0.0
        %225 = vmatprep.subr.mxu0 0.0
        %226 = vmatpush1.msra.mxu0 0.0
        %227 = vmatprep.subr.mxu0 0.0
        %228 = vmatpush1.msra.mxu0 0.0
        %229 = vmatprep.subr.mxu0 0.0
        %230 = vmatpush1.msra.mxu0 0.0
        %231 = vmatprep.subr.mxu0 0.0
        %232 = vmatpush1.msra.mxu0 0.0
        %233 = vmatprep.subr.mxu0 0.0
        %234 = vmatpush1.msra.mxu0 0.0
        %235 = vmatprep.subr.mxu0 0.0
        %236 = vmatpush1.msra.mxu0 0.0
        %237 = vmatprep.subr.mxu0 0.0
        %238 = vmatpush1.msra.mxu0 0.0
        %239 = vmatprep.subr.mxu0 0.0
        %240 = vmatpush1.msra.mxu0 0.0
        %241 = vmatprep.subr.mxu0 0.0
        %242 = vmatpush1.msra.mxu0 0.0
        %243 = vmatprep.subr.mxu0 0.0
        %244 = vmatpush1.msra.mxu0 0.0
        %245 = vmatprep.subr.mxu0 0.0
        %246 = vmatpush1.msra.mxu0 0.0
        %247 = vmatprep.subr.mxu0 0.0
        %248 = vmatpush1.msra.mxu0 0.0
        %249 = vmatprep.subr.mxu0 0.0
        %250 = vmatpush1.msra.mxu0 0.0
        %251 = vmatprep.subr.mxu0 0.0
        %252 = vmatpush1.msra.mxu0 0.0
        %253 = vmatprep.subr.mxu0 0.0
        %254 = vmatpush1.msra.mxu0 0.0
        %255 = vmatprep.mubr.f32.mxu0 0.0
        %256 = vmatmul.mubr.f32.gmra.mrb[0].mxu0 %v174
        %v257 = vpop.f32.mrb[0].mxu0
        %v258 = vadd.f32 0.0, %v257
        %v259 = vpop.f32.mrb[0].mxu0
        %260 = vdwg.mxu0
        %261 = vst [vmem:[%s173] sm:$0xff] %v258
        %s262 = sand.u32 %s75, 1
        %s263 = scalar_lea.sflag [#allocation4], %s262
        %s264 = sand.u32 %s75, 1
        %s265 = smul.addr %s264, 8
        %s266 = scalar_lea.vmem [#allocation7], %s265
        // Predicated region
        $region37: #{tpu_custom_call.1} parent=27 // pred_check
          %p267 = pneg %p85
        $region38: #{tpu_custom_call.1} parent=27 // pred_check_branch
          %269 = sbr.rel (%p267) target = $region40
        $region39: #{tpu_custom_call.1} parent=27 // pred_region
          %s271 = ssub.s32 128, 128
          %272 = vsyncadd %s263, %s271
          %s273 = smul.addr %s20, 128
          %s274 = scalar_lea.hbm %s2, %s273
          %s276 = sshll.u32 %s266, 4
          %s277 = int_to_ptr.vmem [resolvable:$true] %s276
          %279 = dma.vmem_to_hbm [thread:$0]  %s277, 128, %s274, %s263
        $region40: #{tpu_custom_call.1} parent=27 // pred_fallthru
          _
      $region28: #{tpu_custom_call.1} parent=5 // pred_fallthru
        _
      %p280 = scmp.le.s32.totalorder 2, %s15
      // Predicated region
      $region41: #{tpu_custom_call.1} parent=5 // pred_check
        %p281 = pneg %p280
      $region42: #{tpu_custom_call.1} parent=5 // pred_check_branch
        %283 = sbr.rel (%p281) target = $region44
      $region43: #{tpu_custom_call.1} parent=5 // pred_region
        %s284 = ssub.s32 %s15, 2
        // Predicated region
        $region45: #{tpu_custom_call.1} parent=43 // pred_check
          %p285 = pneg %p91
        $region46: #{tpu_custom_call.1} parent=43 // pred_check_branch
          %287 = sbr.rel (%p285) target = $region48
        $region47: #{tpu_custom_call.1} parent=43 // pred_region
          %s288 = sand.u32 %s76, 1
          %s289 = scalar_lea.sflag [#allocation4], %s288
          %s290 = sand.u32 %s76, 1
          %s291 = smul.addr %s290, 8
          %s292 = scalar_lea.vmem [#allocation7], %s291
          %293 = dma.done %s289, 128
        $region48: #{tpu_custom_call.1} parent=43 // pred_fallthru
          _
      $region44: #{tpu_custom_call.1} parent=5 // pred_fallthru
        _
    $region6: #{tpu_custom_call.1} parent=1 // loop_footer
      %s19 = sadd.s32 1, %s15
    $region7: #{tpu_custom_call.1} parent=1 // loop_footer_branch
      %14 = sbr.rel target = $region3
    $region8: #{tpu_custom_call.1} parent=1 // loop_exit
      _
    %294 = vsyncpa [#allocation3], 1
    %s295 = scalar_lea.sflag [#allocation3], 1
    %296 = vsyncpa %s295, 1
    %297 = vsyncpa [#allocation6], 1
    %298 = vsyncpa [#allocation4], 1
    %s299 = scalar_lea.sflag [#allocation4], 1
    %300 = vsyncpa %s299, 1

</llo_original>
